<compile_context>
chip_gen: v5e
topology: v5e:2x2
jax: 0.10.0
libtpu: 0.0.40
codegen_flags: <defaults>
</compile_context>

<pallas_src>
import jax
import jax.numpy as jnp
from jax.experimental import pallas as pl
from jax.experimental.pallas import tpu as pltpu


def _round_up(x, m):
    return ((x + m - 1) // m) * m


def _linker_kernel_direct(x_ref, e_ref, o_ref):
    """Single reduction step: whole D fits in one tile -> no accumulator.

    x_ref: (tb, td)  image-feature tile
    e_ref: (td, tt)  pre-transposed tag-embedding tile
    o_ref: (tb, tt)  cls_score tile
    """
    o_ref[...] = jnp.dot(
        x_ref[...], e_ref[...], preferred_element_type=jnp.float32
    ).astype(o_ref.dtype)


def _linker_kernel_acc(x_ref, e_ref, o_ref, acc_ref):
    """Multi-step reduction over D (grid axis 2), f32 accumulator in VMEM."""
    @pl.when(pl.program_id(2) == 0)
    def _():
        acc_ref[...] = jnp.zeros_like(acc_ref)

    acc_ref[...] += jnp.dot(
        x_ref[...], e_ref[...], preferred_element_type=jnp.float32
    )

    @pl.when(pl.program_id(2) == pl.num_programs(2) - 1)
    def _():
        o_ref[...] = acc_ref[...].astype(o_ref.dtype)


def tag_recommender_forward(
    imgs,
    tag_embedding,
    *,
    tb_max=256,
    tt_max=512,
    td_max=1024,
    compute_dtype=jnp.bfloat16,
    out_dtype=jnp.float32,
):
    """cls_score = imgs @ tag_embedding.T  via a Pallas tiled matmul.

    imgs:          (B, D) image feature vectors
    tag_embedding: (T, D) tag table (static weight)
    returns:       (B, T) similarity scores in `out_dtype`
    """
    B, D = imgs.shape
    T, D2 = tag_embedding.shape
    assert D == D2, "embed_dim mismatch between imgs and tag_embedding"

    # Cast to the compute dtype at the boundary (f32 accumulation inside the
    # kernel).  Pre-transpose the static tag table once: (T, D) -> (D, T).
    x = imgs.astype(compute_dtype)
    e = jnp.transpose(tag_embedding).astype(compute_dtype)

    # --- tile selection -----------------------------------------------------
    # Batch tile covers the whole (padded) batch up to tb_max so the tag table
    # is streamed from HBM as few times as possible.
    tb = min(tb_max, _round_up(B, 16))
    tt = min(tt_max, _round_up(T, 128))
    td = min(td_max, _round_up(D, 128))

    # If the batch collapses to a single tile, keep at least 2 tag tiles so
    # both TensorCores (v7x) get parallel work.  Never go below 128 lanes.
    if _round_up(B, tb) // tb == 1:
        while tt > 128 and _round_up(T, tt) // tt < 2:
            tt //= 2

    B_pad = _round_up(B, tb)
    T_pad = _round_up(T, tt)
    D_pad = _round_up(D, td)

    if (B_pad, D_pad) != (B, D):
        x = jnp.pad(x, ((0, B_pad - B), (0, D_pad - D)))
    if (D_pad, T_pad) != (D, T):
        e = jnp.pad(e, ((0, D_pad - D), (0, T_pad - T)))

    bt, ttiles, kt = B_pad // tb, T_pad // tt, D_pad // td

    itemsize_in = jnp.dtype(compute_dtype).itemsize
    cost = pl.CostEstimate(
        flops=2 * B_pad * T_pad * D_pad,
        transcendentals=0,
        bytes_accessed=(
            B_pad * D_pad * itemsize_in
            + D_pad * T_pad * itemsize_in
            + B_pad * T_pad * jnp.dtype(out_dtype).itemsize
        ),
    )
    compiler_params = pltpu.CompilerParams(
        dimension_semantics=(
            ("parallel", "parallel") if kt == 1
            else ("parallel", "parallel", "arbitrary")
        ),
        vmem_limit_bytes=48 * 1024 * 1024,  # safe on v5e/v6e (128 MiB) and v7x (64 MiB)
    )
    out_shape = jax.ShapeDtypeStruct((B_pad, T_pad), out_dtype)

    if kt == 1:
        # Full reduction in one step: no scratch accumulator, no pl.when.
        out = pl.pallas_call(
            _linker_kernel_direct,
            out_shape=out_shape,
            grid_spec=pltpu.PrefetchScalarGridSpec(
                num_scalar_prefetch=0,
                grid=(bt, ttiles),
                in_specs=[
                    pl.BlockSpec((tb, td), lambda i, j: (i, 0)),
                    pl.BlockSpec((td, tt), lambda i, j: (0, j)),
                ],
                out_specs=pl.BlockSpec((tb, tt), lambda i, j: (i, j)),
            ),
            compiler_params=compiler_params,
            cost_estimate=cost,
        )(x, e)
    else:
        out = pl.pallas_call(
            _linker_kernel_acc,
            out_shape=out_shape,
            grid_spec=pltpu.PrefetchScalarGridSpec(
                num_scalar_prefetch=0,
                grid=(bt, ttiles, kt),
                in_specs=[
                    pl.BlockSpec((tb, td), lambda i, j, k: (i, k)),
                    pl.BlockSpec((td, tt), lambda i, j, k: (k, j)),
                ],
                out_specs=pl.BlockSpec((tb, tt), lambda i, j, k: (i, j)),
                scratch_shapes=[pltpu.VMEM((tb, tt), jnp.float32)],
            ),
            compiler_params=compiler_params,
            cost_estimate=cost,
        )(x, e)

    if (B_pad, T_pad) != (B, T):
        out = out[:B, :T]
    return out


def kaiming_normal_init(key, shape, dtype=jnp.float32):
    """Stand-in for nn.init.kaiming_normal_ on (num_tags, embed_dim):
    fan_in = embed_dim, gain = sqrt(2)."""
    fan_in = shape[1]
    std = jnp.sqrt(2.0 / fan_in)
    return jax.random.normal(key, shape, dtype) * std


if __name__ == "__main__":
    # Small shapes consistent with the module: a batch of image feature
    # vectors and a TagTower(num_tags, embed_dim) embedding table.
    B = 8           # batch of image feature vectors
    D = 128         # embed_dim
    NUM_TAGS = 256  # num_tags

    key = jax.random.PRNGKey(0)
    k_img, k_tag = jax.random.split(key)

    imgs = jax.random.normal(k_img, (B, D), jnp.float32)
    tag_embedding = kaiming_normal_init(k_tag, (NUM_TAGS, D))

    ref = imgs @ tag_embedding.T

    # Default fast path: bf16 inputs, f32 accumulation.
    cls_score = tag_recommender_forward(imgs, tag_embedding)
    cls_score = jax.block_until_ready(cls_score)
    assert cls_score.shape == (B, NUM_TAGS)
    assert jnp.allclose(cls_score, ref, atol=5e-2, rtol=5e-2), "bf16 path mismatch"

    # Full-precision path (exactness check of the tiling / padding logic).
    cls_score_f32 = tag_recommender_forward(
        imgs, tag_embedding, compute_dtype=jnp.float32
    )
    cls_score_f32 = jax.block_until_ready(cls_score_f32)
    assert jnp.allclose(cls_score_f32, ref, atol=1e-4, rtol=1e-4), "f32 path mismatch"

    print("KERNEL_OK")
</pallas_src>

<mosaic_0001>
module attributes {stable_mosaic.version = 11 : i64} {
  func.func @_linker_kernel_direct(%arg0: i32, %arg1: i32, %arg2: memref<16x128xbf16, #tpu.memory_space<vmem>>, %arg3: memref<128x128xbf16, #tpu.memory_space<vmem>>, %arg4: memref<16x128xf32, #tpu.memory_space<vmem>>) attributes {dimension_semantics = [#tpu.dimension_semantics<parallel>, #tpu.dimension_semantics<parallel>], iteration_bounds = array<i64: 1, 2>, scalar_prefetch = 0 : i64, scratch_operands = 0 : i64, tpu.core_type = #tpu.core_type<tc>, window_params = [{transform_indices = @transform_0, window_bounds = array<i64: 16, 128>}, {transform_indices = @transform_1, window_bounds = array<i64: 128, 128>}, {transform_indices = @transform_2, window_bounds = array<i64: 16, 128>}]} {
    %c0 = arith.constant 0 : index
    %c0_0 = arith.constant 0 : index
    %0 = vector.load %arg2[%c0, %c0_0] : memref<16x128xbf16, #tpu.memory_space<vmem>>, vector<16x128xbf16>
    %c0_1 = arith.constant 0 : index
    %c0_2 = arith.constant 0 : index
    %1 = vector.load %arg3[%c0_1, %c0_2] : memref<128x128xbf16, #tpu.memory_space<vmem>>, vector<128x128xbf16>
    %cst = arith.constant dense<0.000000e+00> : vector<16x128xf32>
    %2 = tpu.matmul %0, %1, %cst {dimension_numbers = #tpu.dot_dimension_numbers<[1], [0], [0], [1], [0, 0, 1, 1], [], []>} : vector<16x128xbf16>, vector<128x128xbf16>, vector<16x128xf32> -> vector<16x128xf32>
    %c0_3 = arith.constant 0 : index
    %c0_4 = arith.constant 0 : index
    %3 = vector.load %arg4[%c0_3, %c0_4] : memref<16x128xf32, #tpu.memory_space<vmem>>, vector<16x128xf32>
    tpu.vector_store %arg4[%c0_3, %c0_4], %2 {strides = array<i32>} : memref<16x128xf32, #tpu.memory_space<vmem>>, vector<16x128xf32>,
    return
  }
  func.func @transform_0(%arg0: i32, %arg1: i32) -> (i32, i32) {
    %c0_i32 = arith.constant 0 : i32
    %c0_i32_0 = arith.constant 0 : i32
    return %arg0, %c0_i32 : i32, i32
  }
  func.func @transform_1(%arg0: i32, %arg1: i32) -> (i32, i32) {
    %c0_i32 = arith.constant 0 : i32
    %c0_i32_0 = arith.constant 0 : i32
    return %c0_i32, %arg1 : i32, i32
  }
  func.func @transform_2(%arg0: i32, %arg1: i32) -> (i32, i32) {
    %c0_i32 = arith.constant 0 : i32
    return %arg0, %arg1 : i32, i32
  }
}

</mosaic_0001>

<llo_original>
// kernel: tpu_custom_call.1
$region0: #{tpu_custom_call.1}
  #allocation0 [shape = 'u32[]', space=smem, size = 0x4, offset = 0x4, fixed_abs, tag = 'smem constant byte address 0x4 - core index']
  #allocation1 [shape = 'u32[72,128]{1,0:T(1,128)}', space=vmem, size = 0x9000, scoped, tag = 'internal scratch']
  %s0 = inlined_call_operand.hbm [shape: bf16[16,128], index: 0, kind: input, shape index: {}]
  %s1 = inlined_call_operand.hbm [shape: bf16[128,256], index: 1, kind: input, shape index: {}]
  %s2 = inlined_call_operand.hbm [shape: f32[16,256], index: 2, kind: output, shape index: {}]
  %s3 = sld [smem:[#allocation0]]
  $region49: #{tpu_custom_call.1} parent=0
    _
  %s5 = ssub.s32 1, %s3
  %s6 = scalar_select 0, %s5, %s3
  $region1: #{tpu_custom_call.1} parent=0
    #allocation2 [shape = 'u8[4096]{0}', space=vmem, size = 0x1000, scoped, tag = 'input window, operand 0, single buffered']
    #allocation3 [shape = 's32[2]{0}', space=sflag, size = 0x8, scoped, tag = 'scoped memory for tpu_custom_call.1']
    #allocation4 [shape = 's32[2]{0}', space=sflag, size = 0x8, scoped, tag = 'scoped memory for tpu_custom_call.1']
    #allocation5 [shape = 'u8[65536]{0}', space=vmem, size = 0x10000, scoped, tag = 'input window, operand 1']
    #allocation6 [shape = 's32[2]{0}', space=sflag, size = 0x8, scoped, tag = 'scoped memory for tpu_custom_call.1']
    #allocation7 [shape = 'u8[16384]{0}', space=vmem, size = 0x4000, scoped, tag = 'output window, operand 0']
    %7 = vsyncpa [#allocation3], 0
    %8 = vsyncpa [#allocation6], 0
    %s9 = scalar_lea.sflag [#allocation6], 1
    %10 = vsyncpa %s9, 0
    %11 = vsyncpa [#allocation4], 0
    %s12 = scalar_lea.sflag [#allocation4], 1
    %13 = vsyncpa %s12, 0
    loop: start=0, step=1, limit=4
    $region2: #{tpu_custom_call.1} parent=1 // loop_pre_header
      _
    $region3: #{tpu_custom_call.1} parent=1 // loop_header
      %s15 = sphi 0, %s19
      %p16 = scmp.ge.s32.totalorder %s15, 4
      %s22 = sphi 0, %s34
      %s23 = sphi 0, %s30
      %s24 = sphi 0, %s22
      %s25 = sphi 0, %s23
      %s26 = sphi 0, %s24
      %s27 = sphi 0, %s25
      %s37 = sphi 0, %s39
      %s40 = sphi 0, %s37
      %s41 = sphi 0, %s40
      %s57 = sphi 0, %s41
      %s63 = sphi 0, %s65
      %s66 = sphi 0, %s63
      %s67 = sphi 0, %s66
      %s83 = sphi 0, %s67
      %s91 = sphi 0, %s93
      %s94 = sphi 0, %s91
      %s95 = sphi 0, %s94
      %s111 = sphi 0, %s95
    $region4: #{tpu_custom_call.1} parent=1 // loop_header_branch
      %18 = sbr.rel (%p16) target = $region8
    $region5: #{tpu_custom_call.1} parent=1 // loop_body
      %s20 = ssub.s32 %s15, 1
      %s21 = ssub.s32 %s15, 2
      %s28 = sadd.s32 1, %s23
      %p29 = scmp.ge.s32.totalorder %s28, 2
      %s30 = scalar_select %p29, 0, %s28
      %s31 = sadd.s32 1, %s22
      %s32 = scalar_select %p29, %s31, %s22
      %p33 = scmp.ge.s32.totalorder %s32, 1
      %s34 = scalar_select %p33, 0, %s32
      %s35 = ssub.s32 %s22, %s34
      %p36 = scmp.eq.s32.totalorder %s35, 0
      %s38 = sadd.s32 %s37, 1
      %s39 = scalar_select %p36, %s37, %s38
      %p42 = pneg %p36
      %p43 = scmp.eq.s32.totalorder %s15, 1
      %p44 = por %p42, %p43
      %p45 = scmp.ne.s32.totalorder %s37, %s40
      %p46 = scmp.eq.s32.totalorder %s15, 0
      %p47 = por %p45, %p46
      %p48 = scmp.ne.s32.totalorder %s37, %s40
      %p49 = scmp.eq.s32.totalorder %s20, 1
      %p50 = por %p48, %p49
      %p51 = scmp.ne.s32.totalorder %s40, %s41
      %p52 = scmp.eq.s32.totalorder %s20, 0
      %p53 = por %p51, %p52
      %p54 = scmp.ne.s32.totalorder %s40, %s41
      %p55 = scmp.eq.s32.totalorder %s21, 1
      %p56 = por %p54, %p55
      %p58 = scmp.ne.s32.totalorder %s41, %s57
      %p59 = scmp.eq.s32.totalorder %s21, 0
      %p60 = por %p58, %p59
      %s61 = ssub.s32 %s23, %s30
      %p62 = scmp.eq.s32.totalorder %s61, 0
      %s64 = sadd.s32 %s63, 1
      %s65 = scalar_select %p62, %s63, %s64
      %p68 = pneg %p62
      %p69 = scmp.eq.s32.totalorder %s15, 1
      %p70 = por %p68, %p69
      %p71 = scmp.ne.s32.totalorder %s63, %s66
      %p72 = scmp.eq.s32.totalorder %s15, 0
      %p73 = por %p71, %p72
      %p74 = scmp.ne.s32.totalorder %s63, %s66
      %p75 = scmp.eq.s32.totalorder %s20, 1
      %p76 = por %p74, %p75
      %p77 = scmp.ne.s32.totalorder %s66, %s67
      %p78 = scmp.eq.s32.totalorder %s20, 0
      %p79 = por %p77, %p78
      %p80 = scmp.ne.s32.totalorder %s66, %s67
      %p81 = scmp.eq.s32.totalorder %s21, 1
      %p82 = por %p80, %p81
      %p84 = scmp.ne.s32.totalorder %s67, %s83
      %p85 = scmp.eq.s32.totalorder %s21, 0
      %p86 = por %p84, %p85
      %s87 = ssub.s32 %s22, %s34
      %s88 = ssub.s32 %s23, %s30
      %s89 = sor.u32 %s87, %s88
      %p90 = scmp.eq.s32.totalorder %s89, 0
      %s92 = sadd.s32 %s91, 1
      %s93 = scalar_select %p90, %s91, %s92
      %p96 = pneg %p90
      %p97 = scmp.eq.s32.totalorder %s15, 1
      %p98 = por %p96, %p97
      %p99 = scmp.ne.s32.totalorder %s91, %s94
      %p100 = scmp.eq.s32.totalorder %s15, 0
      %p101 = por %p99, %p100
      %p102 = scmp.ne.s32.totalorder %s91, %s94
      %p103 = scmp.eq.s32.totalorder %s20, 1
      %p104 = por %p102, %p103
      %p105 = scmp.ne.s32.totalorder %s94, %s95
      %p106 = scmp.eq.s32.totalorder %s20, 0
      %p107 = por %p105, %p106
      %p108 = scmp.ne.s32.totalorder %s94, %s95
      %p109 = scmp.eq.s32.totalorder %s21, 1
      %p110 = por %p108, %p109
      %p112 = scmp.ne.s32.totalorder %s95, %s111
      %p113 = scmp.eq.s32.totalorder %s21, 0
      %p114 = por %p112, %p113
      %p115 = scmp.le.s32.totalorder 1, %s15
      %p116 = scmp.lt.s32.totalorder %s15, 3
      %p117 = pnand %p115, %p116
      %p118 = pneg %p117
      // Predicated region
      $region9: #{tpu_custom_call.1} parent=5 // pred_check
        _
      $region10: #{tpu_custom_call.1} parent=5 // pred_check_branch
        %120 = sbr.rel (%p117) target = $region12
      $region11: #{tpu_custom_call.1} parent=5 // pred_region
        %s121 = ssub.s32 %s15, 1
        // Predicated region
        $region13: #{tpu_custom_call.1} parent=11 // pred_check
          %p122 = pneg %p53
        $region14: #{tpu_custom_call.1} parent=11 // pred_check_branch
          %124 = sbr.rel (%p122) target = $region16
        $region15: #{tpu_custom_call.1} parent=11 // pred_region
          %s125 = smul.u32 2, %s24
          %127 = vsyncadd [#allocation3], 0
          %s128 = smul.addr %s125, 4
          %s129 = scalar_lea.hbm %s0, %s128
          %s130 = sshll.u32 %s129, 4
          %s131 = int_to_ptr.hbm [resolvable:$true] %s130
          %s132 = sshll.u32 [#allocation2], 4
          %s133 = int_to_ptr.vmem [resolvable:$true] %s132
          %138 = dma.hbm_to_vmem [thread:$0]  %s131, 128, %s133, [#allocation3], 64, 64, 4
        $region16: #{tpu_custom_call.1} parent=11 // pred_fallthru
          _
      $region12: #{tpu_custom_call.1} parent=5 // pred_fallthru
        _
      %p139 = scmp.lt.s32.totalorder %s15, 2
      // Predicated region
      $region17: #{tpu_custom_call.1} parent=5 // pred_check
        %p140 = pneg %p139
      $region18: #{tpu_custom_call.1} parent=5 // pred_check_branch
        %142 = sbr.rel (%p140) target = $region20
      $region19: #{tpu_custom_call.1} parent=5 // pred_region
        // Predicated region
        $region21: #{tpu_custom_call.1} parent=19 // pred_check
          %p143 = pneg %p73
        $region22: #{tpu_custom_call.1} parent=19 // pred_check_branch
          %145 = sbr.rel (%p143) target = $region24
        $region23: #{tpu_custom_call.1} parent=19 // pred_region
          %s146 = sand.u32 %s63, 1
          %s147 = scalar_lea.sflag [#allocation6], %s146
          %s148 = sand.u32 %s63, 1
          %s149 = smul.addr %s148, 64
          %s150 = scalar_lea.vmem [#allocation5], %s149
          %152 = vsyncadd %s147, 0
          %s153 = smul.addr %s23, 4
          %s154 = scalar_lea.hbm %s1, %s153
          %s155 = sshll.u32 %s154, 4
          %s156 = int_to_ptr.hbm [resolvable:$true] %s155
          %s157 = sshll.u32 %s150, 4
          %s158 = int_to_ptr.vmem [resolvable:$true] %s157
          %163 = dma.hbm_to_vmem [thread:$0]  %s156, 1024, %s158, %s147, 128, 64, 4
        $region24: #{tpu_custom_call.1} parent=19 // pred_fallthru
          _
      $region20: #{tpu_custom_call.1} parent=5 // pred_fallthru
        _
      %p164 = scmp.le.s32.totalorder 1, %s15
      %p165 = scmp.lt.s32.totalorder %s15, 3
      %p166 = pnand %p164, %p165
      %p167 = pneg %p166
      // Predicated region
      $region25: #{tpu_custom_call.1} parent=5 // pred_check
        _
      $region26: #{tpu_custom_call.1} parent=5 // pred_check_branch
        %169 = sbr.rel (%p166) target = $region28
      $region27: #{tpu_custom_call.1} parent=5 // pred_region
        %s170 = ssub.s32 %s15, 1
        // Predicated region
        $region29: #{tpu_custom_call.1} parent=27 // pred_check
          %p171 = pneg %p53
        $region30: #{tpu_custom_call.1} parent=27 // pred_check_branch
          %173 = sbr.rel (%p171) target = $region32
        $region31: #{tpu_custom_call.1} parent=27 // pred_region
          %175 = dma.done [#allocation3], 128
        $region32: #{tpu_custom_call.1} parent=27 // pred_fallthru
          _
        %s176 = sand.u32 %s66, 1
        %s177 = scalar_lea.sflag [#allocation6], %s176
        %s178 = sand.u32 %s66, 1
        %s179 = smul.addr %s178, 64
        %s180 = scalar_lea.vmem [#allocation5], %s179
        // Predicated region
        $region33: #{tpu_custom_call.1} parent=27 // pred_check
          %p181 = pneg %p79
        $region34: #{tpu_custom_call.1} parent=27 // pred_check_branch
          %183 = sbr.rel (%p181) target = $region36
        $region35: #{tpu_custom_call.1} parent=27 // pred_region
          %185 = dma.done %s177, 1024
        $region36: #{tpu_custom_call.1} parent=27 // pred_fallthru
          _
        %p186 = pneg %p53
        %p187 = pneg %p50
        %s188 = sand.u32 %s66, 1
        %s189 = scalar_lea.sflag [#allocation6], %s188
        %s190 = sand.u32 %s66, 1
        %s191 = smul.addr %s190, 64
        %s192 = scalar_lea.vmem [#allocation5], %s191
        %p193 = pneg %p79
        %p194 = pneg %p76
        %p195 = pneg %p107
        %p196 = pneg %p104
        %s197 = sand.u32 %s94, 1
        %s198 = scalar_lea.sflag [#allocation4], %s197
        %s199 = sand.u32 %s94, 1
        %s200 = smul.addr %s199, 16
        %s201 = scalar_lea.vmem [#allocation7], %s200
        %s202 = smul.u32 2, %s24
        %s203 = smul.u32 2, %s24
        %v204 = vld [vmem:[#allocation2] sm:$0xf]
        %v205 = vld [vmem:[#allocation2 + $0x4] sm:$0xf]
        %v206 = vld [vmem:[%s180] sm:$0xf]
        %v207 = vld [vmem:[%s180 + $0x4] sm:$0xf]
        %v208 = vld [vmem:[%s180 + $0x8] sm:$0xf]
        %v209 = vld [vmem:[%s180 + $0xc] sm:$0xf]
        %v210 = vld [vmem:[%s180 + $0x10] sm:$0xf]
        %v211 = vld [vmem:[%s180 + $0x14] sm:$0xf]
        %v212 = vld [vmem:[%s180 + $0x18] sm:$0xf]
        %v213 = vld [vmem:[%s180 + $0x1c] sm:$0xf]
        %v214 = vld [vmem:[%s180 + $0x20] sm:$0xf]
        %v215 = vld [vmem:[%s180 + $0x24] sm:$0xf]
        %v216 = vld [vmem:[%s180 + $0x28] sm:$0xf]
        %v217 = vld [vmem:[%s180 + $0x2c] sm:$0xf]
        %v218 = vld [vmem:[%s180 + $0x30] sm:$0xf]
        %v219 = vld [vmem:[%s180 + $0x34] sm:$0xf]
        %v220 = vld [vmem:[%s180 + $0x38] sm:$0xf]
        %v221 = vld [vmem:[%s180 + $0x3c] sm:$0xf]
        %v224 = vunpack.c.l.b16 %v204
        %v225 = vunpack.c.l.b16 %v205
        %v226 = vpack.c.b16 %v225, %v224
        %v244 = vunpack.c.l.b16 %v206
        %v245 = vunpack.c.l.b16 %v207
        %v246 = vunpack.c.l.b16 %v208
        %v247 = vunpack.c.l.b16 %v209
        %v248 = vunpack.c.l.b16 %v210
        %v249 = vunpack.c.l.b16 %v211
        %v250 = vunpack.c.l.b16 %v212
        %v251 = vunpack.c.l.b16 %v213
        %v252 = vunpack.c.l.b16 %v214
        %v253 = vunpack.c.l.b16 %v215
        %v254 = vunpack.c.l.b16 %v216
        %v255 = vunpack.c.l.b16 %v217
        %v256 = vunpack.c.l.b16 %v218
        %v257 = vunpack.c.l.b16 %v219
        %v258 = vunpack.c.l.b16 %v220
        %v259 = vunpack.c.l.b16 %v221
        %v260 = vpack.c.b16 %v245, %v244
        %v261 = vpack.c.b16 %v247, %v246
        %v262 = vpack.c.b16 %v249, %v248
        %v263 = vpack.c.b16 %v251, %v250
        %v264 = vpack.c.b16 %v253, %v252
        %v265 = vpack.c.b16 %v255, %v254
        %v266 = vpack.c.b16 %v257, %v256
        %v267 = vpack.c.b16 %v259, %v258
        %276 = vmatpush.bf16.msra.mxu0 %v267
        %277 = vmatpush.bf16.msra.mxu0 %v266
        %278 = vmatpush.bf16.msra.mxu0 %v265
        %279 = vmatpush.bf16.msra.mxu0 %v264
        %280 = vmatpush.bf16.msra.mxu0 %v263
        %281 = vmatpush.bf16.msra.mxu0 %v262
        %282 = vmatpush.bf16.msra.mxu0 %v261
        %283 = vmatpush.bf16.msra.mxu0 %v260
        %284 = vmatmul.bf16.gmra.mxu0 %v226
        %v285 = vpop.f32.mrf.mxu0
        %v286 = vadd.f32 0.0, %v285
        %v287 = vpop.f32.mrf.mxu0
        %v288 = vadd.f32 0.0, %v287
        %289 = vdwg.mxu0
        %290 = vst [vmem:[%s201] sm:$0xff] %v286
        %291 = vst [vmem:[%s201 + $0x8] sm:$0xff] %v288
        %s292 = sand.u32 %s94, 1
        %s293 = scalar_lea.sflag [#allocation4], %s292
        %s294 = sand.u32 %s94, 1
        %s295 = smul.addr %s294, 16
        %s296 = scalar_lea.vmem [#allocation7], %s295
        // Predicated region
        $region37: #{tpu_custom_call.1} parent=27 // pred_check
          %p297 = pneg %p104
        $region38: #{tpu_custom_call.1} parent=27 // pred_check_branch
          %299 = sbr.rel (%p297) target = $region40
        $region39: #{tpu_custom_call.1} parent=27 // pred_region
          %s300 = smul.u32 2, %s24
          %302 = vsyncadd %s293, 0
          %s303 = smul.addr %s300, 2
          %s304 = sadd.s32 %s25, %s303
          %s305 = smul.addr %s304, 8
          %s306 = scalar_lea.hbm %s2, %s305
          %s307 = sshll.u32 %s296, 4
          %s308 = int_to_ptr.vmem [resolvable:$true] %s307
          %s309 = sshll.u32 %s306, 4
          %s310 = int_to_ptr.hbm [resolvable:$true] %s309
          %315 = dma.vmem_to_hbm [thread:$0]  %s308, 256, %s310, %s293, 128, 256, 8
        $region40: #{tpu_custom_call.1} parent=27 // pred_fallthru
          _
      $region28: #{tpu_custom_call.1} parent=5 // pred_fallthru
        _
      %p316 = scmp.le.s32.totalorder 2, %s15
      // Predicated region
      $region41: #{tpu_custom_call.1} parent=5 // pred_check
        %p317 = pneg %p316
      $region42: #{tpu_custom_call.1} parent=5 // pred_check_branch
        %319 = sbr.rel (%p317) target = $region44
      $region43: #{tpu_custom_call.1} parent=5 // pred_region
        %s320 = ssub.s32 %s15, 2
        // Predicated region
        $region45: #{tpu_custom_call.1} parent=43 // pred_check
          %p321 = pneg %p110
        $region46: #{tpu_custom_call.1} parent=43 // pred_check_branch
          %323 = sbr.rel (%p321) target = $region48
        $region47: #{tpu_custom_call.1} parent=43 // pred_region
          %s324 = sand.u32 %s95, 1
          %s325 = scalar_lea.sflag [#allocation4], %s324
          %s326 = sand.u32 %s95, 1
          %s327 = smul.addr %s326, 16
          %s328 = scalar_lea.vmem [#allocation7], %s327
          %330 = dma.done %s325, 256
        $region48: #{tpu_custom_call.1} parent=43 // pred_fallthru
          _
      $region44: #{tpu_custom_call.1} parent=5 // pred_fallthru
        _
    $region6: #{tpu_custom_call.1} parent=1 // loop_footer
      %s19 = sadd.s32 1, %s15
    $region7: #{tpu_custom_call.1} parent=1 // loop_footer_branch
      %14 = sbr.rel target = $region3
    $region8: #{tpu_custom_call.1} parent=1 // loop_exit
      _
    %331 = vsyncpa [#allocation3], 1
    %s332 = scalar_lea.sflag [#allocation3], 1
    %333 = vsyncpa %s332, 1
    %334 = vsyncpa [#allocation6], 1
    %s335 = scalar_lea.sflag [#allocation6], 1
    %336 = vsyncpa %s335, 1
    %337 = vsyncpa [#allocation4], 1
    %s338 = scalar_lea.sflag [#allocation4], 1
    %339 = vsyncpa %s338, 1

</llo_original>
